<compile_context>
chip_gen: v7x
topology: tpu7x:2x2x1
jax: 0.10.0
libtpu: 0.0.40
codegen_flags: <defaults>
</compile_context>

<pallas_src>
import jax
import jax.numpy as jnp
from jax.experimental import pallas as pl
from jax.experimental.pallas import tpu as pltpu


def mlp_kernel(xT_ref, w1_ref, b1_ref, w2_ref, b2_ref, o_ref):
    xT = xT_ref[...]                                       # (in_dim, tile_n), lane-dense
    h = jnp.dot(w1_ref[...], xT, preferred_element_type=jnp.float32)   # (hid, tile_n)
    h = jnp.maximum(h + b1_ref[...], 0.0)                  # bias + ReLU in f32
    o = jnp.dot(w2_ref[...], h, preferred_element_type=jnp.float32)    # (out, tile_n)
    o = o + b2_ref[...]
    o_ref[...] = o.astype(o_ref.dtype)


def _round_up(v, m):
    return (v + m - 1) // m * m


def _choose_tiles(n_lanes, target_tile, *, min_grid=4, min_tile=1024):
    """Pick (tile_n, num_tiles) with tile_n a multiple of 128 and small padding."""
    num_tiles = pl.cdiv(n_lanes, target_tile)
    # Give v7x's two TensorCores work once N is big enough to split cheaply.
    if n_lanes >= min_grid * min_tile:
        num_tiles = max(num_tiles, min_grid)
    tile_n = _round_up(pl.cdiv(n_lanes, num_tiles), 128)
    num_tiles = pl.cdiv(n_lanes, tile_n)
    return tile_n, num_tiles


def mlp_forward(x, w1, b1, w2, b2, *, target_tile=32768):
    """y = relu(x @ w1.T + b1) @ w2.T + b2  (PyTorch Linear semantics)."""
    n, in_dim = x.shape
    hid = w1.shape[0]
    out_dim = w2.shape[0]

    # Wrapper-side layout plumbing (free): rows of x -> lane axis.
    xT = jnp.asarray(x, jnp.float32).T                     # (in_dim, n)
    n_lanes = max(128, _round_up(n, 128))
    tile_n, num_tiles = _choose_tiles(n_lanes, target_tile)
    n_pad = tile_n * num_tiles
    if n_pad != n:
        xT = jnp.pad(xT, ((0, 0), (0, n_pad - n)))         # ragged edge handled here

    w1f = jnp.asarray(w1, jnp.float32)                     # (hid, in_dim) — no transpose
    w2f = jnp.asarray(w2, jnp.float32)                     # (out_dim, hid)
    b1c = jnp.asarray(b1, jnp.float32).reshape(hid, 1)     # column biases, lane-broadcast
    b2c = jnp.asarray(b2, jnp.float32).reshape(out_dim, 1)

    grid_spec = pltpu.PrefetchScalarGridSpec(
        num_scalar_prefetch=0,
        grid=(num_tiles,),
        in_specs=[
            pl.BlockSpec((in_dim, tile_n), lambda i: (0, i)),   # x tile (lane-dense)
            pl.BlockSpec((hid, in_dim), lambda i: (0, 0)),      # W1 resident
            pl.BlockSpec((hid, 1), lambda i: (0, 0)),           # b1 resident
            pl.BlockSpec((out_dim, hid), lambda i: (0, 0)),     # W2 resident
            pl.BlockSpec((out_dim, 1), lambda i: (0, 0)),       # b2 resident
        ],
        out_specs=pl.BlockSpec((out_dim, tile_n), lambda i: (0, i)),
    )

    oT = pl.pallas_call(
        mlp_kernel,
        out_shape=jax.ShapeDtypeStruct((out_dim, n_pad), jnp.float32),
        grid_spec=grid_spec,
        compiler_params=pltpu.CompilerParams(
            dimension_semantics=("parallel",)),
    )(xT, w1f, b1c, w2f, b2c)

    # Back to the module's (N, out_dim) layout; drop lane padding.
    return oT[:, :n].T.astype(x.dtype)


def init_params(key):
    # Deterministic init mimicking nn.Linear default (uniform +-1/sqrt(fan_in)).
    k1, k2, k3, k4 = jax.random.split(key, 4)
    bound1 = 1.0 / jnp.sqrt(3.0)
    bound2 = 1.0 / jnp.sqrt(4.0)
    w1 = jax.random.uniform(k1, (4, 3), jnp.float32, -bound1, bound1)
    b1 = jax.random.uniform(k2, (4,), jnp.float32, -bound1, bound1)
    w2 = jax.random.uniform(k3, (5, 4), jnp.float32, -bound2, bound2)
    b2 = jax.random.uniform(k4, (5,), jnp.float32, -bound2, bound2)
    return w1, b1, w2, b2


def reference(x, w1, b1, w2, b2):
    return jnp.maximum(x @ w1.T + b1[None, :], 0.0) @ w2.T + b2[None, :]


if __name__ == "__main__":
    key = jax.random.PRNGKey(0)
    kx, kp, kb = jax.random.split(key, 3)
    w1, b1, w2, b2 = init_params(kp)

    # 1) The literal module workload: x = torch.randn(3, 3).
    x_small = jax.random.normal(kx, (3, 3), jnp.float32)
    out_small = jax.block_until_ready(mlp_forward(x_small, w1, b1, w2, b2))
    ref_small = reference(x_small, w1, b1, w2, b2)
    assert out_small.shape == (3, 5)
    assert jnp.allclose(out_small, ref_small, atol=1e-4), "small-N mismatch"

    # 2) Ragged N (not a tile multiple) through the multi-step parallel grid.
    x_big = jax.random.normal(kb, (1000, 3), jnp.float32)
    out_big = jax.block_until_ready(
        mlp_forward(x_big, w1, b1, w2, b2, target_tile=256))
    ref_big = reference(x_big, w1, b1, w2, b2)
    assert out_big.shape == (1000, 5)
    assert jnp.allclose(out_big, ref_big, atol=1e-4), "tiled-N mismatch"

    print("KERNEL_OK")
</pallas_src>

<mosaic_0001>
module attributes {stable_mosaic.version = 11 : i64} {
  func.func @mlp_kernel(%arg0: i32, %arg1: memref<3x128xf32, #tpu.memory_space<vmem>>, %arg2: memref<4x3xf32, #tpu.memory_space<vmem>>, %arg3: memref<4x1xf32, #tpu.memory_space<vmem>>, %arg4: memref<5x4xf32, #tpu.memory_space<vmem>>, %arg5: memref<5x1xf32, #tpu.memory_space<vmem>>, %arg6: memref<5x128xf32, #tpu.memory_space<vmem>>) attributes {dimension_semantics = [#tpu.dimension_semantics<parallel>], iteration_bounds = array<i64: 1>, scalar_prefetch = 0 : i64, scratch_operands = 0 : i64, tpu.core_type = #tpu.core_type<tc>, window_params = [{transform_indices = @transform_0, window_bounds = array<i64: 3, 128>}, {pipeline_mode = #tpu.pipeline_mode<synchronous>, transform_indices = @transform_1, window_bounds = array<i64: 4, 3>}, {pipeline_mode = #tpu.pipeline_mode<synchronous>, transform_indices = @transform_2, window_bounds = array<i64: 4, 1>}, {pipeline_mode = #tpu.pipeline_mode<synchronous>, transform_indices = @transform_3, window_bounds = array<i64: 5, 4>}, {pipeline_mode = #tpu.pipeline_mode<synchronous>, transform_indices = @transform_4, window_bounds = array<i64: 5, 1>}, {transform_indices = @transform_5, window_bounds = array<i64: 5, 128>}]} {
    %c0 = arith.constant 0 : index
    %c0_0 = arith.constant 0 : index
    %0 = vector.load %arg1[%c0, %c0_0] : memref<3x128xf32, #tpu.memory_space<vmem>>, vector<3x128xf32>
    %c0_1 = arith.constant 0 : index
    %c0_2 = arith.constant 0 : index
    %1 = vector.load %arg2[%c0_1, %c0_2] : memref<4x3xf32, #tpu.memory_space<vmem>>, vector<4x3xf32>
    %cst = arith.constant dense<0.000000e+00> : vector<4x128xf32>
    %2 = tpu.matmul %1, %0, %cst {dimension_numbers = #tpu.dot_dimension_numbers<[1], [0], [0], [1], [0, 0, 1, 1], [], []>} : vector<4x3xf32>, vector<3x128xf32>, vector<4x128xf32> -> vector<4x128xf32>
    %c0_3 = arith.constant 0 : index
    %c0_4 = arith.constant 0 : index
    %3 = vector.load %arg3[%c0_3, %c0_4] : memref<4x1xf32, #tpu.memory_space<vmem>>, vector<4x1xf32>
    %4 = vector.broadcast %3 : vector<4x1xf32> to vector<4x128xf32>
    %5 = arith.addf %2, %4 : vector<4x128xf32>
    %cst_5 = arith.constant 0.000000e+00 : f32
    %6 = vector.broadcast %cst_5 : f32 to vector<4x128xf32>
    %7 = arith.maximumf %5, %6 : vector<4x128xf32>
    %c0_6 = arith.constant 0 : index
    %c0_7 = arith.constant 0 : index
    %8 = vector.load %arg4[%c0_6, %c0_7] : memref<5x4xf32, #tpu.memory_space<vmem>>, vector<5x4xf32>
    %cst_8 = arith.constant dense<0.000000e+00> : vector<5x128xf32>
    %9 = tpu.matmul %8, %7, %cst_8 {dimension_numbers = #tpu.dot_dimension_numbers<[1], [0], [0], [1], [0, 0, 1, 1], [], []>} : vector<5x4xf32>, vector<4x128xf32>, vector<5x128xf32> -> vector<5x128xf32>
    %c0_9 = arith.constant 0 : index
    %c0_10 = arith.constant 0 : index
    %10 = vector.load %arg5[%c0_9, %c0_10] : memref<5x1xf32, #tpu.memory_space<vmem>>, vector<5x1xf32>
    %11 = vector.broadcast %10 : vector<5x1xf32> to vector<5x128xf32>
    %12 = arith.addf %9, %11 : vector<5x128xf32>
    %c0_11 = arith.constant 0 : index
    %c0_12 = arith.constant 0 : index
    %13 = vector.load %arg6[%c0_11, %c0_12] : memref<5x128xf32, #tpu.memory_space<vmem>>, vector<5x128xf32>
    tpu.vector_store %arg6[%c0_11, %c0_12], %12 {strides = array<i32>} : memref<5x128xf32, #tpu.memory_space<vmem>>, vector<5x128xf32>,
    return
  }
  func.func @transform_0(%arg0: i32) -> (i32, i32) {
    %c0_i32 = arith.constant 0 : i32
    %c0_i32_0 = arith.constant 0 : i32
    return %c0_i32, %arg0 : i32, i32
  }
  func.func @transform_1(%arg0: i32) -> (i32, i32) {
    %c0_i32 = arith.constant 0 : i32
    %c0_i32_0 = arith.constant 0 : i32
    %c0_i32_1 = arith.constant 0 : i32
    return %c0_i32, %c0_i32_0 : i32, i32
  }
  func.func @transform_2(%arg0: i32) -> (i32, i32) {
    %c0_i32 = arith.constant 0 : i32
    %c0_i32_0 = arith.constant 0 : i32
    %c0_i32_1 = arith.constant 0 : i32
    return %c0_i32, %c0_i32_0 : i32, i32
  }
  func.func @transform_3(%arg0: i32) -> (i32, i32) {
    %c0_i32 = arith.constant 0 : i32
    %c0_i32_0 = arith.constant 0 : i32
    %c0_i32_1 = arith.constant 0 : i32
    return %c0_i32, %c0_i32_0 : i32, i32
  }
  func.func @transform_4(%arg0: i32) -> (i32, i32) {
    %c0_i32 = arith.constant 0 : i32
    %c0_i32_0 = arith.constant 0 : i32
    %c0_i32_1 = arith.constant 0 : i32
    return %c0_i32, %c0_i32_0 : i32, i32
  }
  func.func @transform_5(%arg0: i32) -> (i32, i32) {
    %c0_i32 = arith.constant 0 : i32
    %c0_i32_0 = arith.constant 0 : i32
    return %c0_i32, %arg0 : i32, i32
  }
}

</mosaic_0001>

<llo_original>
// kernel: tpu_custom_call.1
$region0: #{tpu_custom_call.1}
  #allocation0 [shape = 'u32[]', space=smem, size = 0x4, offset = 0x4, fixed_abs, tag = 'smem constant byte address 0x4 - core index']
  #allocation1 [shape = 'u32[144,128]{1,0:T(1,128)}', space=vmem, size = 0x12000, scoped, tag = 'internal scratch']
  %s0 = inlined_call_operand.vmem [shape: f32[3,128], index: 0, kind: input, shape index: {}]
  %s1 = inlined_call_operand.vmem [shape: f32[4,3], index: 1, kind: input, shape index: {}]
  %s2 = inlined_call_operand.vmem [shape: f32[4,1], index: 2, kind: input, shape index: {}]
  %s3 = inlined_call_operand.vmem [shape: f32[5,4], index: 3, kind: input, shape index: {}]
  %s4 = inlined_call_operand.vmem [shape: f32[5,1], index: 4, kind: input, shape index: {}]
  %s5 = inlined_call_operand.hbm [shape: f32[5,128], index: 5, kind: output, shape index: {}]
  %s6 = sld [smem:[#allocation0]]
  $region30: #{tpu_custom_call.1} parent=0
    _
  %s8 = ssub.s32 1, %s6
  %s9 = scalar_select 0, %s8, %s6
  $region1: #{tpu_custom_call.1} parent=0
    #allocation2 [shape = 'u8[4096]{0}', space=vmem, size = 0x1000, scoped, tag = 'output window, operand 0, single buffered']
    #allocation3 [shape = 's32[1]{0}', space=sflag, size = 0x4, scoped, tag = 'scoped memory for tpu_custom_call.1']
    %10 = vsyncpa [#allocation3], 0
    // Predicated region
    $region2: #{tpu_custom_call.1} parent=1 // pred_check
      _
    $region3: #{tpu_custom_call.1} parent=1 // pred_check_branch
      %12 = sbr.rel (0) target = $region5
    $region4: #{tpu_custom_call.1} parent=1 // pred_region
      _
    $region5: #{tpu_custom_call.1} parent=1 // pred_fallthru
      _
    // Predicated region
    $region6: #{tpu_custom_call.1} parent=1 // pred_check
      _
    $region7: #{tpu_custom_call.1} parent=1 // pred_check_branch
      %14 = sbr.rel (0) target = $region9
    $region8: #{tpu_custom_call.1} parent=1 // pred_region
      _
    $region9: #{tpu_custom_call.1} parent=1 // pred_fallthru
      _
    // Predicated region
    $region10: #{tpu_custom_call.1} parent=1 // pred_check
      _
    $region11: #{tpu_custom_call.1} parent=1 // pred_check_branch
      %16 = sbr.rel (0) target = $region13
    $region12: #{tpu_custom_call.1} parent=1 // pred_region
      _
    $region13: #{tpu_custom_call.1} parent=1 // pred_fallthru
      _
    // Predicated region
    $region14: #{tpu_custom_call.1} parent=1 // pred_check
      _
    $region15: #{tpu_custom_call.1} parent=1 // pred_check_branch
      %18 = sbr.rel (0) target = $region17
    $region16: #{tpu_custom_call.1} parent=1 // pred_region
      _
    $region17: #{tpu_custom_call.1} parent=1 // pred_fallthru
      _
    // Predicated region
    $region18: #{tpu_custom_call.1} parent=1 // pred_check
      _
    $region19: #{tpu_custom_call.1} parent=1 // pred_check_branch
      %20 = sbr.rel (0) target = $region21
    $region20: #{tpu_custom_call.1} parent=1 // pred_region
      _
    $region21: #{tpu_custom_call.1} parent=1 // pred_fallthru
      _
    %v21 = vld [vmem:[%s0] sm:$0x7]
    %v22 = vld [vmem:[%s1] sm:$0xf]
    %v23 = vld [vmem:[%s2] sm:$0xf]
    %25 = vset.pattern.permute.xlu0 0
    %26 = vperm.xlu0 %25, %v23
    %v27 = vpop.permute.xlu0 %26
    %vm29 = vcmask 23552
    %v31 = vsel %vm29, %v22, 0
    %vm33 = vcmask 1042432
    %v35 = vsel %vm33, %v21, 0
    %37 = vmatprep.subr.mxu0 0.0
    %38 = vmatpush1.msra.mxu0 %v35
    %39 = vmatprep.subr.mxu0 0.0
    %40 = vmatpush1.msra.mxu0 0.0
    %41 = vmatprep.subr.mxu0 0.0
    %42 = vmatpush1.msra.mxu0 0.0
    %43 = vmatprep.subr.mxu0 0.0
    %44 = vmatpush1.msra.mxu0 0.0
    %45 = vmatprep.subr.mxu0 0.0
    %46 = vmatpush1.msra.mxu0 0.0
    %47 = vmatprep.subr.mxu0 0.0
    %48 = vmatpush1.msra.mxu0 0.0
    %49 = vmatprep.subr.mxu0 0.0
    %50 = vmatpush1.msra.mxu0 0.0
    %51 = vmatprep.subr.mxu0 0.0
    %52 = vmatpush1.msra.mxu0 0.0
    %53 = vmatprep.subr.mxu0 0.0
    %54 = vmatpush1.msra.mxu0 0.0
    %55 = vmatprep.subr.mxu0 0.0
    %56 = vmatpush1.msra.mxu0 0.0
    %57 = vmatprep.subr.mxu0 0.0
    %58 = vmatpush1.msra.mxu0 0.0
    %59 = vmatprep.subr.mxu0 0.0
    %60 = vmatpush1.msra.mxu0 0.0
    %61 = vmatprep.subr.mxu0 0.0
    %62 = vmatpush1.msra.mxu0 0.0
    %63 = vmatprep.subr.mxu0 0.0
    %64 = vmatpush1.msra.mxu0 0.0
    %65 = vmatprep.subr.mxu0 0.0
    %66 = vmatpush1.msra.mxu0 0.0
    %67 = vmatprep.subr.mxu0 0.0
    %68 = vmatpush1.msra.mxu0 0.0
    %69 = vmatprep.subr.mxu0 0.0
    %70 = vmatpush1.msra.mxu0 0.0
    %71 = vmatprep.subr.mxu0 0.0
    %72 = vmatpush1.msra.mxu0 0.0
    %73 = vmatprep.subr.mxu0 0.0
    %74 = vmatpush1.msra.mxu0 0.0
    %75 = vmatprep.subr.mxu0 0.0
    %76 = vmatpush1.msra.mxu0 0.0
    %77 = vmatprep.subr.mxu0 0.0
    %78 = vmatpush1.msra.mxu0 0.0
    %79 = vmatprep.subr.mxu0 0.0
    %80 = vmatpush1.msra.mxu0 0.0
    %81 = vmatprep.subr.mxu0 0.0
    %82 = vmatpush1.msra.mxu0 0.0
    %83 = vmatprep.subr.mxu0 0.0
    %84 = vmatpush1.msra.mxu0 0.0
    %85 = vmatprep.subr.mxu0 0.0
    %86 = vmatpush1.msra.mxu0 0.0
    %87 = vmatprep.subr.mxu0 0.0
    %88 = vmatpush1.msra.mxu0 0.0
    %89 = vmatprep.subr.mxu0 0.0
    %90 = vmatpush1.msra.mxu0 0.0
    %91 = vmatprep.subr.mxu0 0.0
    %92 = vmatpush1.msra.mxu0 0.0
    %93 = vmatprep.subr.mxu0 0.0
    %94 = vmatpush1.msra.mxu0 0.0
    %95 = vmatprep.subr.mxu0 0.0
    %96 = vmatpush1.msra.mxu0 0.0
    %97 = vmatprep.subr.mxu0 0.0
    %98 = vmatpush1.msra.mxu0 0.0
    %99 = vmatprep.subr.mxu0 0.0
    %100 = vmatpush1.msra.mxu0 0.0
    %101 = vmatprep.mubr.f32.mxu0 0.0
    %102 = vmatmul.mubr.f32.gmra.mrb[0].mxu0 %v31
    %v103 = vpop.f32.mrb[0].mxu0
    %v104 = vadd.f32 %v27, %v103
    %v105 = vpop.f32.mrb[0].mxu0
    %106 = vdwg.mxu0
    %v107 = vmax.f32 %v104, 0.0
    %v108 = vld [vmem:[%s3] sm:$0x1f]
    %v109 = vld [vmem:[%s4] sm:$0x1f]
    %111 = vset.pattern.permute.xlu0 0
    %112 = vperm.xlu0 %111, %v109
    %v113 = vpop.permute.xlu0 %112
    %vm115 = vcmask 31744
    %v117 = vsel %vm115, %v108, 0
    %vm119 = vcmask 1043456
    %v121 = vsel %vm119, %v107, 0
    %123 = vmatprep.subr.mxu0 0.0
    %124 = vmatpush1.msra.mxu0 %v121
    %125 = vmatprep.subr.mxu0 0.0
    %126 = vmatpush1.msra.mxu0 0.0
    %127 = vmatprep.subr.mxu0 0.0
    %128 = vmatpush1.msra.mxu0 0.0
    %129 = vmatprep.subr.mxu0 0.0
    %130 = vmatpush1.msra.mxu0 0.0
    %131 = vmatprep.subr.mxu0 0.0
    %132 = vmatpush1.msra.mxu0 0.0
    %133 = vmatprep.subr.mxu0 0.0
    %134 = vmatpush1.msra.mxu0 0.0
    %135 = vmatprep.subr.mxu0 0.0
    %136 = vmatpush1.msra.mxu0 0.0
    %137 = vmatprep.subr.mxu0 0.0
    %138 = vmatpush1.msra.mxu0 0.0
    %139 = vmatprep.subr.mxu0 0.0
    %140 = vmatpush1.msra.mxu0 0.0
    %141 = vmatprep.subr.mxu0 0.0
    %142 = vmatpush1.msra.mxu0 0.0
    %143 = vmatprep.subr.mxu0 0.0
    %144 = vmatpush1.msra.mxu0 0.0
    %145 = vmatprep.subr.mxu0 0.0
    %146 = vmatpush1.msra.mxu0 0.0
    %147 = vmatprep.subr.mxu0 0.0
    %148 = vmatpush1.msra.mxu0 0.0
    %149 = vmatprep.subr.mxu0 0.0
    %150 = vmatpush1.msra.mxu0 0.0
    %151 = vmatprep.subr.mxu0 0.0
    %152 = vmatpush1.msra.mxu0 0.0
    %153 = vmatprep.subr.mxu0 0.0
    %154 = vmatpush1.msra.mxu0 0.0
    %155 = vmatprep.subr.mxu0 0.0
    %156 = vmatpush1.msra.mxu0 0.0
    %157 = vmatprep.subr.mxu0 0.0
    %158 = vmatpush1.msra.mxu0 0.0
    %159 = vmatprep.subr.mxu0 0.0
    %160 = vmatpush1.msra.mxu0 0.0
    %161 = vmatprep.subr.mxu0 0.0
    %162 = vmatpush1.msra.mxu0 0.0
    %163 = vmatprep.subr.mxu0 0.0
    %164 = vmatpush1.msra.mxu0 0.0
    %165 = vmatprep.subr.mxu0 0.0
    %166 = vmatpush1.msra.mxu0 0.0
    %167 = vmatprep.subr.mxu0 0.0
    %168 = vmatpush1.msra.mxu0 0.0
    %169 = vmatprep.subr.mxu0 0.0
    %170 = vmatpush1.msra.mxu0 0.0
    %171 = vmatprep.subr.mxu0 0.0
    %172 = vmatpush1.msra.mxu0 0.0
    %173 = vmatprep.subr.mxu0 0.0
    %174 = vmatpush1.msra.mxu0 0.0
    %175 = vmatprep.subr.mxu0 0.0
    %176 = vmatpush1.msra.mxu0 0.0
    %177 = vmatprep.subr.mxu0 0.0
    %178 = vmatpush1.msra.mxu0 0.0
    %179 = vmatprep.subr.mxu0 0.0
    %180 = vmatpush1.msra.mxu0 0.0
    %181 = vmatprep.subr.mxu0 0.0
    %182 = vmatpush1.msra.mxu0 0.0
    %183 = vmatprep.subr.mxu0 0.0
    %184 = vmatpush1.msra.mxu0 0.0
    %185 = vmatprep.subr.mxu0 0.0
    %186 = vmatpush1.msra.mxu0 0.0
    %187 = vmatprep.mubr.f32.mxu0 0.0
    %188 = vmatmul.mubr.f32.gmra.mrb[0].mxu0 %v117
    %v189 = vpop.f32.mrb[0].mxu0
    %v190 = vadd.f32 %v113, %v189
    %v191 = vpop.f32.mrb[0].mxu0
    %192 = vdwg.mxu0
    %193 = vst [vmem:[#allocation2] sm:$0x1f] %v190
    // Predicated region
    $region22: #{tpu_custom_call.1} parent=1 // pred_check
      _
    $region23: #{tpu_custom_call.1} parent=1 // pred_check_branch
      %195 = sbr.rel (0) target = $region25
    $region24: #{tpu_custom_call.1} parent=1 // pred_region
      %s197 = ssub.s32 128, 128
      %198 = vsyncadd [#allocation3], %s197
      %s200 = sshll.u32 [#allocation2], 4
      %s201 = int_to_ptr.vmem [resolvable:$true] %s200
      %203 = dma.vmem_to_hbm [thread:$0]  %s201, 128, %s5, [#allocation3]
    $region25: #{tpu_custom_call.1} parent=1 // pred_fallthru
      _
    // Predicated region
    $region26: #{tpu_custom_call.1} parent=1 // pred_check
      _
    $region27: #{tpu_custom_call.1} parent=1 // pred_check_branch
      %205 = sbr.rel (0) target = $region29
    $region28: #{tpu_custom_call.1} parent=1 // pred_region
      %206 = dma.done [#allocation3], 128
    $region29: #{tpu_custom_call.1} parent=1 // pred_fallthru
      _
    %207 = vsyncpa [#allocation3], 1

</llo_original>
